<compile_context>
chip_gen: v7x
topology: tpu7x:2x2x1
jax: 0.10.0
libtpu: 0.0.40
codegen_flags: <defaults>
</compile_context>

<pallas_src>
import functools

import jax
import jax.numpy as jnp
from jax import lax
from jax.experimental import pallas as pl
from jax.experimental.pallas import tpu as pltpu


def construct_image_kernel(c_ref, out_ref, *, B, H, W):
    # c_ref:   SMEM (B, 15) f32 polynomial coefficients (scalar reads)
    # out_ref: VMEM (B*H, W) f32 sigmoid(image); batch folded into sublanes
    row = lax.broadcasted_iota(jnp.int32, (H, W), 0).astype(jnp.float32)
    col = lax.broadcasted_iota(jnp.int32, (H, W), 1).astype(jnp.float32)
    xg = row * (10.0 / (H - 1)) - 5.0           # torch.linspace(-5, 5, H)[h]
    yg = -(col * (10.0 / (W - 1)) - 5.0)        # -torch.linspace(-5, 5, W)[w]

    # Accumulate sum_{i,j} c[b, k(i,j)] * x^i * y^j with incremental powers
    # (term order matches torch: i in range(5), j in range(5 - i)).
    accs = [jnp.zeros((H, W), jnp.float32) for _ in range(B)]
    k = 0
    xpow = jnp.ones((H, W), jnp.float32)        # x^i
    for i in range(5):
        term = xpow                             # x^i * y^j, starting at j=0
        for j in range(5 - i):
            for b in range(B):
                accs[b] = accs[b] + c_ref[b, k] * term
            k += 1
            if j < 4 - i:
                term = term * yg
        if i < 4:
            xpow = xpow * xg

    for b in range(B):
        out_ref[pl.ds(b * H, H), :] = jax.nn.sigmoid(accs[b])


def init_params(key, in_dim):
    """PyTorch nn.Linear default init; weights stored (fan_in, fan_out)."""
    def linear(k, fan_in, fan_out):
        kw, kb = jax.random.split(k)
        bound = 1.0 / jnp.sqrt(float(fan_in))
        w = jax.random.uniform(kw, (fan_in, fan_out), jnp.float32, -bound, bound)
        b = jax.random.uniform(kb, (1, fan_out), jnp.float32, -bound, bound)
        return w, b

    k1, k2, k3 = jax.random.split(key, 3)
    w1, b1 = linear(k1, in_dim, 16)
    w2, b2 = linear(k2, 16, 16)
    w3, b3 = linear(k3, 16, 15)
    return w1, b1, w2, b2, w3, b3


@functools.partial(jax.jit, static_argnames=("ot_h", "ot_w"))
def solo_generator(x, params, *, ot_h, ot_w):
    """Forward pass of SoloGenerator.  x: (B, in_h, in_w) float32."""
    B = x.shape[0]
    in_dim = x.shape[1] * x.shape[2]
    w1, b1, w2, b2, w3, b3 = params

    # --- tiny MLP: hoisted out of the kernel (pure XLA glue, f32) -----------
    xf = x.reshape(B, in_dim).astype(jnp.float32)
    h = jnp.maximum(xf @ w1 + b1, 0.0)
    h = jnp.maximum(h @ w2 + b2, 0.0)
    c = (h @ w3 + b3).astype(jnp.float32)                       # (B, 15)

    assert ot_w % 128 == 0 and ot_h % 8 == 0, "lane/sublane-dense output expected"

    kernel = functools.partial(construct_image_kernel, B=B, H=ot_h, W=ot_w)
    out2d = pl.pallas_call(
        kernel,
        out_shape=jax.ShapeDtypeStruct((B * ot_h, ot_w), jnp.float32),
        in_specs=[pl.BlockSpec(memory_space=pltpu.MemorySpace.SMEM)],
        out_specs=pl.BlockSpec(memory_space=pltpu.MemorySpace.VMEM),
        cost_estimate=pl.CostEstimate(
            flops=(14 + 2 * 15 * B) * ot_h * ot_w,      # power updates + FMAs
            transcendentals=2 * B * ot_h * ot_w,        # exp + recip per elem
            bytes_accessed=B * 15 * 4 + B * ot_h * ot_w * 4),
    )(c)

    # Flat (B*H, W) -> (B, H, W): row-major contiguous, free metadata in XLA.
    return out2d.reshape(B, ot_h, ot_w)


def reference_forward(x, params, ot_h, ot_w):
    """Pure-JAX f32 mirror of the torch module (linspace/meshgrid basis)."""
    B = x.shape[0]
    w1, b1, w2, b2, w3, b3 = params
    xf = x.reshape(B, -1)
    h = jnp.maximum(xf @ w1 + b1, 0.0)
    h = jnp.maximum(h @ w2 + b2, 0.0)
    c = h @ w3 + b3
    xs = jnp.linspace(-5.0, 5.0, ot_h)
    ys = -jnp.linspace(-5.0, 5.0, ot_w)
    xx, yy = jnp.meshgrid(xs, ys, indexing="ij")
    basis = jnp.stack([xx ** i * yy ** j for i in range(5) for j in range(5 - i)])
    img = jnp.einsum('bj,jhw->bhw', c, basis.astype(jnp.float32))
    return jax.nn.sigmoid(img)


if __name__ == "__main__":
    # Shapes from the original module: in_h = in_w = 64, ot_h = ot_w = 128.
    B, in_h, in_w = 2, 64, 64
    ot_h, ot_w = 128, 128

    key = jax.random.PRNGKey(0)
    kx, kp = jax.random.split(key)
    x = jax.random.normal(kx, (B, in_h, in_w), dtype=jnp.float32)
    params = init_params(kp, in_h * in_w)

    out = solo_generator(x, params, ot_h=ot_h, ot_w=ot_w)
    out = jax.block_until_ready(out)

    ref = reference_forward(x, params, ot_h, ot_w)
    assert out.shape == (B, ot_h, ot_w)
    max_err = float(jnp.max(jnp.abs(out - ref)))
    assert max_err < 2e-3, max_err

    print("KERNEL_OK")
</pallas_src>

<mosaic_0001>
module attributes {stable_mosaic.version = 11 : i64} {
  func.func @construct_image_kernel(%arg0: memref<2x15xf32, #tpu.memory_space<smem>>, %arg1: memref<256x128xf32, #tpu.memory_space<vmem>>) attributes {dimension_semantics = [], scalar_prefetch = 0 : i64, scratch_operands = 0 : i64, tpu.core_type = #tpu.core_type<tc>} {
    %0 = tpu.iota {dimensions = array<i32: 0>} : vector<128x128xi32>
    %1 = arith.sitofp %0 : vector<128x128xi32> to vector<128x128xf32>
    %2 = tpu.iota {dimensions = array<i32: 1>} : vector<128x128xi32>
    %3 = arith.sitofp %2 : vector<128x128xi32> to vector<128x128xf32>
    %cst = arith.constant 0.0787401571 : f32
    %4 = vector.broadcast %cst : f32 to vector<128x128xf32>
    %5 = arith.mulf %1, %4 : vector<128x128xf32>
    %cst_0 = arith.constant 5.000000e+00 : f32
    %6 = vector.broadcast %cst_0 : f32 to vector<128x128xf32>
    %7 = arith.subf %5, %6 : vector<128x128xf32>
    %cst_1 = arith.constant 0.0787401571 : f32
    %8 = vector.broadcast %cst_1 : f32 to vector<128x128xf32>
    %9 = arith.mulf %3, %8 : vector<128x128xf32>
    %cst_2 = arith.constant 5.000000e+00 : f32
    %10 = vector.broadcast %cst_2 : f32 to vector<128x128xf32>
    %11 = arith.subf %9, %10 : vector<128x128xf32>
    %cst_3 = arith.constant 0.000000e+00 : f32
    %12 = vector.broadcast %cst_3 : f32 to vector<128x128xf32>
    %13 = arith.subf %12, %11 : vector<128x128xf32>
    %cst_4 = arith.constant 0.000000e+00 : f32
    %14 = vector.broadcast %cst_4 : f32 to vector<128x128xf32>
    %cst_5 = arith.constant 0.000000e+00 : f32
    %15 = vector.broadcast %cst_5 : f32 to vector<128x128xf32>
    %cst_6 = arith.constant 1.000000e+00 : f32
    %16 = vector.broadcast %cst_6 : f32 to vector<128x128xf32>
    %c0 = arith.constant 0 : index
    %c0_7 = arith.constant 0 : index
    %17 = memref.load %arg0[%c0, %c0_7] : memref<2x15xf32, #tpu.memory_space<smem>>
    %18 = vector.broadcast %17 : f32 to vector<128x128xf32>
    %19 = arith.mulf %18, %16 : vector<128x128xf32>
    %20 = arith.addf %14, %19 : vector<128x128xf32>
    %c1 = arith.constant 1 : index
    %c0_8 = arith.constant 0 : index
    %21 = memref.load %arg0[%c1, %c0_8] : memref<2x15xf32, #tpu.memory_space<smem>>
    %22 = vector.broadcast %21 : f32 to vector<128x128xf32>
    %23 = arith.mulf %22, %16 : vector<128x128xf32>
    %24 = arith.addf %15, %23 : vector<128x128xf32>
    %25 = arith.mulf %16, %13 : vector<128x128xf32>
    %c0_9 = arith.constant 0 : index
    %c1_10 = arith.constant 1 : index
    %26 = memref.load %arg0[%c0_9, %c1_10] : memref<2x15xf32, #tpu.memory_space<smem>>
    %27 = vector.broadcast %26 : f32 to vector<128x128xf32>
    %28 = arith.mulf %27, %25 : vector<128x128xf32>
    %29 = arith.addf %20, %28 : vector<128x128xf32>
    %c1_11 = arith.constant 1 : index
    %c1_12 = arith.constant 1 : index
    %30 = memref.load %arg0[%c1_11, %c1_12] : memref<2x15xf32, #tpu.memory_space<smem>>
    %31 = vector.broadcast %30 : f32 to vector<128x128xf32>
    %32 = arith.mulf %31, %25 : vector<128x128xf32>
    %33 = arith.addf %24, %32 : vector<128x128xf32>
    %34 = arith.mulf %25, %13 : vector<128x128xf32>
    %c0_13 = arith.constant 0 : index
    %c2 = arith.constant 2 : index
    %35 = memref.load %arg0[%c0_13, %c2] : memref<2x15xf32, #tpu.memory_space<smem>>
    %36 = vector.broadcast %35 : f32 to vector<128x128xf32>
    %37 = arith.mulf %36, %34 : vector<128x128xf32>
    %38 = arith.addf %29, %37 : vector<128x128xf32>
    %c1_14 = arith.constant 1 : index
    %c2_15 = arith.constant 2 : index
    %39 = memref.load %arg0[%c1_14, %c2_15] : memref<2x15xf32, #tpu.memory_space<smem>>
    %40 = vector.broadcast %39 : f32 to vector<128x128xf32>
    %41 = arith.mulf %40, %34 : vector<128x128xf32>
    %42 = arith.addf %33, %41 : vector<128x128xf32>
    %43 = arith.mulf %34, %13 : vector<128x128xf32>
    %c0_16 = arith.constant 0 : index
    %c3 = arith.constant 3 : index
    %44 = memref.load %arg0[%c0_16, %c3] : memref<2x15xf32, #tpu.memory_space<smem>>
    %45 = vector.broadcast %44 : f32 to vector<128x128xf32>
    %46 = arith.mulf %45, %43 : vector<128x128xf32>
    %47 = arith.addf %38, %46 : vector<128x128xf32>
    %c1_17 = arith.constant 1 : index
    %c3_18 = arith.constant 3 : index
    %48 = memref.load %arg0[%c1_17, %c3_18] : memref<2x15xf32, #tpu.memory_space<smem>>
    %49 = vector.broadcast %48 : f32 to vector<128x128xf32>
    %50 = arith.mulf %49, %43 : vector<128x128xf32>
    %51 = arith.addf %42, %50 : vector<128x128xf32>
    %52 = arith.mulf %43, %13 : vector<128x128xf32>
    %c0_19 = arith.constant 0 : index
    %c4 = arith.constant 4 : index
    %53 = memref.load %arg0[%c0_19, %c4] : memref<2x15xf32, #tpu.memory_space<smem>>
    %54 = vector.broadcast %53 : f32 to vector<128x128xf32>
    %55 = arith.mulf %54, %52 : vector<128x128xf32>
    %56 = arith.addf %47, %55 : vector<128x128xf32>
    %c1_20 = arith.constant 1 : index
    %c4_21 = arith.constant 4 : index
    %57 = memref.load %arg0[%c1_20, %c4_21] : memref<2x15xf32, #tpu.memory_space<smem>>
    %58 = vector.broadcast %57 : f32 to vector<128x128xf32>
    %59 = arith.mulf %58, %52 : vector<128x128xf32>
    %60 = arith.addf %51, %59 : vector<128x128xf32>
    %61 = arith.mulf %16, %7 : vector<128x128xf32>
    %c0_22 = arith.constant 0 : index
    %c5 = arith.constant 5 : index
    %62 = memref.load %arg0[%c0_22, %c5] : memref<2x15xf32, #tpu.memory_space<smem>>
    %63 = vector.broadcast %62 : f32 to vector<128x128xf32>
    %64 = arith.mulf %63, %61 : vector<128x128xf32>
    %65 = arith.addf %56, %64 : vector<128x128xf32>
    %c1_23 = arith.constant 1 : index
    %c5_24 = arith.constant 5 : index
    %66 = memref.load %arg0[%c1_23, %c5_24] : memref<2x15xf32, #tpu.memory_space<smem>>
    %67 = vector.broadcast %66 : f32 to vector<128x128xf32>
    %68 = arith.mulf %67, %61 : vector<128x128xf32>
    %69 = arith.addf %60, %68 : vector<128x128xf32>
    %70 = arith.mulf %61, %13 : vector<128x128xf32>
    %c0_25 = arith.constant 0 : index
    %c6 = arith.constant 6 : index
    %71 = memref.load %arg0[%c0_25, %c6] : memref<2x15xf32, #tpu.memory_space<smem>>
    %72 = vector.broadcast %71 : f32 to vector<128x128xf32>
    %73 = arith.mulf %72, %70 : vector<128x128xf32>
    %74 = arith.addf %65, %73 : vector<128x128xf32>
    %c1_26 = arith.constant 1 : index
    %c6_27 = arith.constant 6 : index
    %75 = memref.load %arg0[%c1_26, %c6_27] : memref<2x15xf32, #tpu.memory_space<smem>>
    %76 = vector.broadcast %75 : f32 to vector<128x128xf32>
    %77 = arith.mulf %76, %70 : vector<128x128xf32>
    %78 = arith.addf %69, %77 : vector<128x128xf32>
    %79 = arith.mulf %70, %13 : vector<128x128xf32>
    %c0_28 = arith.constant 0 : index
    %c7 = arith.constant 7 : index
    %80 = memref.load %arg0[%c0_28, %c7] : memref<2x15xf32, #tpu.memory_space<smem>>
    %81 = vector.broadcast %80 : f32 to vector<128x128xf32>
    %82 = arith.mulf %81, %79 : vector<128x128xf32>
    %83 = arith.addf %74, %82 : vector<128x128xf32>
    %c1_29 = arith.constant 1 : index
    %c7_30 = arith.constant 7 : index
    %84 = memref.load %arg0[%c1_29, %c7_30] : memref<2x15xf32, #tpu.memory_space<smem>>
    %85 = vector.broadcast %84 : f32 to vector<128x128xf32>
    %86 = arith.mulf %85, %79 : vector<128x128xf32>
    %87 = arith.addf %78, %86 : vector<128x128xf32>
    %88 = arith.mulf %79, %13 : vector<128x128xf32>
    %c0_31 = arith.constant 0 : index
    %c8 = arith.constant 8 : index
    %89 = memref.load %arg0[%c0_31, %c8] : memref<2x15xf32, #tpu.memory_space<smem>>
    %90 = vector.broadcast %89 : f32 to vector<128x128xf32>
    %91 = arith.mulf %90, %88 : vector<128x128xf32>
    %92 = arith.addf %83, %91 : vector<128x128xf32>
    %c1_32 = arith.constant 1 : index
    %c8_33 = arith.constant 8 : index
    %93 = memref.load %arg0[%c1_32, %c8_33] : memref<2x15xf32, #tpu.memory_space<smem>>
    %94 = vector.broadcast %93 : f32 to vector<128x128xf32>
    %95 = arith.mulf %94, %88 : vector<128x128xf32>
    %96 = arith.addf %87, %95 : vector<128x128xf32>
    %97 = arith.mulf %61, %7 : vector<128x128xf32>
    %c0_34 = arith.constant 0 : index
    %c9 = arith.constant 9 : index
    %98 = memref.load %arg0[%c0_34, %c9] : memref<2x15xf32, #tpu.memory_space<smem>>
    %99 = vector.broadcast %98 : f32 to vector<128x128xf32>
    %100 = arith.mulf %99, %97 : vector<128x128xf32>
    %101 = arith.addf %92, %100 : vector<128x128xf32>
    %c1_35 = arith.constant 1 : index
    %c9_36 = arith.constant 9 : index
    %102 = memref.load %arg0[%c1_35, %c9_36] : memref<2x15xf32, #tpu.memory_space<smem>>
    %103 = vector.broadcast %102 : f32 to vector<128x128xf32>
    %104 = arith.mulf %103, %97 : vector<128x128xf32>
    %105 = arith.addf %96, %104 : vector<128x128xf32>
    %106 = arith.mulf %97, %13 : vector<128x128xf32>
    %c0_37 = arith.constant 0 : index
    %c10 = arith.constant 10 : index
    %107 = memref.load %arg0[%c0_37, %c10] : memref<2x15xf32, #tpu.memory_space<smem>>
    %108 = vector.broadcast %107 : f32 to vector<128x128xf32>
    %109 = arith.mulf %108, %106 : vector<128x128xf32>
    %110 = arith.addf %101, %109 : vector<128x128xf32>
    %c1_38 = arith.constant 1 : index
    %c10_39 = arith.constant 10 : index
    %111 = memref.load %arg0[%c1_38, %c10_39] : memref<2x15xf32, #tpu.memory_space<smem>>
    %112 = vector.broadcast %111 : f32 to vector<128x128xf32>
    %113 = arith.mulf %112, %106 : vector<128x128xf32>
    %114 = arith.addf %105, %113 : vector<128x128xf32>
    %115 = arith.mulf %106, %13 : vector<128x128xf32>
    %c0_40 = arith.constant 0 : index
    %c11 = arith.constant 11 : index
    %116 = memref.load %arg0[%c0_40, %c11] : memref<2x15xf32, #tpu.memory_space<smem>>
    %117 = vector.broadcast %116 : f32 to vector<128x128xf32>
    %118 = arith.mulf %117, %115 : vector<128x128xf32>
    %119 = arith.addf %110, %118 : vector<128x128xf32>
    %c1_41 = arith.constant 1 : index
    %c11_42 = arith.constant 11 : index
    %120 = memref.load %arg0[%c1_41, %c11_42] : memref<2x15xf32, #tpu.memory_space<smem>>
    %121 = vector.broadcast %120 : f32 to vector<128x128xf32>
    %122 = arith.mulf %121, %115 : vector<128x128xf32>
    %123 = arith.addf %114, %122 : vector<128x128xf32>
    %124 = arith.mulf %97, %7 : vector<128x128xf32>
    %c0_43 = arith.constant 0 : index
    %c12 = arith.constant 12 : index
    %125 = memref.load %arg0[%c0_43, %c12] : memref<2x15xf32, #tpu.memory_space<smem>>
    %126 = vector.broadcast %125 : f32 to vector<128x128xf32>
    %127 = arith.mulf %126, %124 : vector<128x128xf32>
    %128 = arith.addf %119, %127 : vector<128x128xf32>
    %c1_44 = arith.constant 1 : index
    %c12_45 = arith.constant 12 : index
    %129 = memref.load %arg0[%c1_44, %c12_45] : memref<2x15xf32, #tpu.memory_space<smem>>
    %130 = vector.broadcast %129 : f32 to vector<128x128xf32>
    %131 = arith.mulf %130, %124 : vector<128x128xf32>
    %132 = arith.addf %123, %131 : vector<128x128xf32>
    %133 = arith.mulf %124, %13 : vector<128x128xf32>
    %c0_46 = arith.constant 0 : index
    %c13 = arith.constant 13 : index
    %134 = memref.load %arg0[%c0_46, %c13] : memref<2x15xf32, #tpu.memory_space<smem>>
    %135 = vector.broadcast %134 : f32 to vector<128x128xf32>
    %136 = arith.mulf %135, %133 : vector<128x128xf32>
    %137 = arith.addf %128, %136 : vector<128x128xf32>
    %c1_47 = arith.constant 1 : index
    %c13_48 = arith.constant 13 : index
    %138 = memref.load %arg0[%c1_47, %c13_48] : memref<2x15xf32, #tpu.memory_space<smem>>
    %139 = vector.broadcast %138 : f32 to vector<128x128xf32>
    %140 = arith.mulf %139, %133 : vector<128x128xf32>
    %141 = arith.addf %132, %140 : vector<128x128xf32>
    %142 = arith.mulf %124, %7 : vector<128x128xf32>
    %c0_49 = arith.constant 0 : index
    %c14 = arith.constant 14 : index
    %143 = memref.load %arg0[%c0_49, %c14] : memref<2x15xf32, #tpu.memory_space<smem>>
    %144 = vector.broadcast %143 : f32 to vector<128x128xf32>
    %145 = arith.mulf %144, %142 : vector<128x128xf32>
    %146 = arith.addf %137, %145 : vector<128x128xf32>
    %c1_50 = arith.constant 1 : index
    %c14_51 = arith.constant 14 : index
    %147 = memref.load %arg0[%c1_50, %c14_51] : memref<2x15xf32, #tpu.memory_space<smem>>
    %148 = vector.broadcast %147 : f32 to vector<128x128xf32>
    %149 = arith.mulf %148, %142 : vector<128x128xf32>
    %150 = arith.addf %141, %149 : vector<128x128xf32>
    %151 = arith.negf %146 : vector<128x128xf32>
    %152 = math.exp %151 : vector<128x128xf32>
    %cst_52 = arith.constant 1.000000e+00 : f32
    %153 = vector.broadcast %cst_52 : f32 to vector<128x128xf32>
    %154 = arith.addf %153, %152 : vector<128x128xf32>
    %155 = arith.divf %153, %154 : vector<128x128xf32>
    %c0_53 = arith.constant 0 : index
    %c0_54 = arith.constant 0 : index
    %156 = vector.load %arg1[%c0_53, %c0_54] : memref<256x128xf32, #tpu.memory_space<vmem>>, vector<128x128xf32>
    tpu.vector_store %arg1[%c0_53, %c0_54], %155 {strides = array<i32>} : memref<256x128xf32, #tpu.memory_space<vmem>>, vector<128x128xf32>,
    %157 = arith.negf %150 : vector<128x128xf32>
    %158 = math.exp %157 : vector<128x128xf32>
    %cst_55 = arith.constant 1.000000e+00 : f32
    %159 = vector.broadcast %cst_55 : f32 to vector<128x128xf32>
    %160 = arith.addf %159, %158 : vector<128x128xf32>
    %161 = arith.divf %159, %160 : vector<128x128xf32>
    %c128 = arith.constant 128 : index
    %c0_56 = arith.constant 0 : index
    %162 = vector.load %arg1[%c128, %c0_56] : memref<256x128xf32, #tpu.memory_space<vmem>>, vector<128x128xf32>
    tpu.vector_store %arg1[%c128, %c0_56], %161 {strides = array<i32>} : memref<256x128xf32, #tpu.memory_space<vmem>>, vector<128x128xf32>,
    return
  }
}

</mosaic_0001>

<llo_original>
// kernel: solo_generator.1
$region0: #{solo_generator.1}
  #allocation0 [shape = 'u32[]', space=smem, size = 0x4, offset = 0x4, fixed_abs, tag = 'smem constant byte address 0x4 - core index']
  #allocation1 [shape = 'u32[144,128]{1,0:T(1,128)}', space=vmem, size = 0x12000, scoped, tag = 'internal scratch']
  %s0 = inlined_call_operand.vmem [shape: f32[2,15], index: 0, kind: input, shape index: {}]
  %s1 = inlined_call_operand.hbm [shape: f32[256,128], index: 1, kind: output, shape index: {}]
  %s2 = sld [smem:[#allocation0]]
  $region18: #{solo_generator.1} parent=0
    _
  %s4 = ssub.s32 1, %s2
  %s5 = scalar_select 0, %s4, %s2
  $region1: #{solo_generator.1} parent=0
    #allocation2 [shape = 'u8[1024]{0}', space=smem, size = 0x400, scoped, tag = 'input window, operand 0, single buffered']
    #allocation3 [shape = 's32[1]{0}', space=sflag, size = 0x4, scoped, tag = 'scoped memory for solo_generator.1']
    #allocation4 [shape = 's32[1]{0}', space=sflag, size = 0x4, scoped, tag = 'scoped memory for solo_generator.1']
    #allocation5 [shape = 'u8[131072]{0}', space=vmem, size = 0x20000, scoped, tag = 'output window, operand 0, single buffered']
    %6 = vsyncpa [#allocation4], 0
    %7 = vsyncpa [#allocation3], 0
    // Predicated region
    $region2: #{solo_generator.1} parent=1 // pred_check
      _
    $region3: #{solo_generator.1} parent=1 // pred_check_branch
      %9 = sbr.rel (0) target = $region5
    $region4: #{solo_generator.1} parent=1 // pred_region
      %s11 = ssub.s32 32, 32
      %12 = vsyncadd [#allocation4], %s11
      %s14 = sshll.u32 %s0, 4
      %s15 = int_to_ptr.vmem [resolvable:$true] %s14
      %17 = dma.vmem_to_smem %s15, 32, [#allocation2], [#allocation4]
    $region5: #{solo_generator.1} parent=1 // pred_fallthru
      _
    // Predicated region
    $region6: #{solo_generator.1} parent=1 // pred_check
      _
    $region7: #{solo_generator.1} parent=1 // pred_check_branch
      %19 = sbr.rel (0) target = $region9
    $region8: #{solo_generator.1} parent=1 // pred_region
      %20 = dma.done [#allocation4], 32
    $region9: #{solo_generator.1} parent=1 // pred_fallthru
      _
    %21 = sfence
    %v22 = vlaneseq
    %v23 = vshrl.u32 %v22, 7
    %v24 = vadd.s32 %v23, 8
    %v25 = vadd.s32 %v23, 16
    %v26 = vadd.s32 %v23, 24
    %v27 = vadd.s32 %v23, 32
    %v28 = vadd.s32 %v23, 40
    %v29 = vadd.s32 %v23, 48
    %v30 = vadd.s32 %v23, 56
    %v31 = vadd.s32 %v23, 64
    %v32 = vadd.s32 %v23, 72
    %v33 = vadd.s32 %v23, 80
    %v34 = vadd.s32 %v23, 88
    %v35 = vadd.s32 %v23, 96
    %v36 = vadd.s32 %v23, 104
    %v37 = vadd.s32 %v23, 112
    %v38 = vadd.s32 %v23, 120
    %v39 = vcvt.s32.f32 %v23
    %v40 = vcvt.s32.f32 %v24
    %v41 = vcvt.s32.f32 %v25
    %v42 = vcvt.s32.f32 %v26
    %v43 = vcvt.s32.f32 %v27
    %v44 = vcvt.s32.f32 %v28
    %v45 = vcvt.s32.f32 %v29
    %v46 = vcvt.s32.f32 %v30
    %v47 = vcvt.s32.f32 %v31
    %v48 = vcvt.s32.f32 %v32
    %v49 = vcvt.s32.f32 %v33
    %v50 = vcvt.s32.f32 %v34
    %v51 = vcvt.s32.f32 %v35
    %v52 = vcvt.s32.f32 %v36
    %v53 = vcvt.s32.f32 %v37
    %v54 = vcvt.s32.f32 %v38
    %v55 = vlaneseq
    %v56 = vand.u32 %v55, 127
    %v57 = vcvt.s32.f32 %v56
    %v58 = vmul.f32 %v39, 0.07874016
    %v59 = vmul.f32 %v40, 0.07874016
    %v60 = vmul.f32 %v41, 0.07874016
    %v61 = vmul.f32 %v42, 0.07874016
    %v62 = vmul.f32 %v43, 0.07874016
    %v63 = vmul.f32 %v44, 0.07874016
    %v64 = vmul.f32 %v45, 0.07874016
    %v65 = vmul.f32 %v46, 0.07874016
    %v66 = vmul.f32 %v47, 0.07874016
    %v67 = vmul.f32 %v48, 0.07874016
    %v68 = vmul.f32 %v49, 0.07874016
    %v69 = vmul.f32 %v50, 0.07874016
    %v70 = vmul.f32 %v51, 0.07874016
    %v71 = vmul.f32 %v52, 0.07874016
    %v72 = vmul.f32 %v53, 0.07874016
    %v73 = vmul.f32 %v54, 0.07874016
    %v74 = vsub.f32 %v58, 5.0
    %v75 = vsub.f32 %v59, 5.0
    %v76 = vsub.f32 %v60, 5.0
    %v77 = vsub.f32 %v61, 5.0
    %v78 = vsub.f32 %v62, 5.0
    %v79 = vsub.f32 %v63, 5.0
    %v80 = vsub.f32 %v64, 5.0
    %v81 = vsub.f32 %v65, 5.0
    %v82 = vsub.f32 %v66, 5.0
    %v83 = vsub.f32 %v67, 5.0
    %v84 = vsub.f32 %v68, 5.0
    %v85 = vsub.f32 %v69, 5.0
    %v86 = vsub.f32 %v70, 5.0
    %v87 = vsub.f32 %v71, 5.0
    %v88 = vsub.f32 %v72, 5.0
    %v89 = vsub.f32 %v73, 5.0
    %v90 = vmul.f32 %v57, 0.07874016
    %v91 = vsub.f32 %v90, 5.0
    %v92 = vsub.f32 0.0, %v91
    %s93 = sld [smem:[#allocation2]]
    %v94 = vstv %s93
    %v95 = vadd.f32 %v94, 0.0
    %s96 = sld [smem:[#allocation2 + $0x80]]
    %v97 = vstv %s96
    %v98 = vadd.f32 %v97, 0.0
    %s99 = sld [smem:[#allocation2 + $0x1]]
    %v100 = vstv %s99
    %v101 = vmul.f32 %v100, %v92
    %v102 = vadd.f32 %v95, %v101
    %s103 = sld [smem:[#allocation2 + $0x81]]
    %v104 = vstv %s103
    %v105 = vmul.f32 %v104, %v92
    %v106 = vadd.f32 %v98, %v105
    %v107 = vmul.f32 %v92, %v92
    %s108 = sld [smem:[#allocation2 + $0x2]]
    %v109 = vstv %s108
    %v110 = vmul.f32 %v109, %v107
    %v111 = vadd.f32 %v102, %v110
    %s112 = sld [smem:[#allocation2 + $0x82]]
    %v113 = vstv %s112
    %v114 = vmul.f32 %v113, %v107
    %v115 = vadd.f32 %v106, %v114
    %v116 = vmul.f32 %v107, %v92
    %s117 = sld [smem:[#allocation2 + $0x3]]
    %v118 = vstv %s117
    %v119 = vmul.f32 %v118, %v116
    %v120 = vadd.f32 %v111, %v119
    %s121 = sld [smem:[#allocation2 + $0x83]]
    %v122 = vstv %s121
    %v123 = vmul.f32 %v122, %v116
    %v124 = vadd.f32 %v115, %v123
    %v125 = vmul.f32 %v116, %v92
    %s126 = sld [smem:[#allocation2 + $0x4]]
    %v127 = vstv %s126
    %v128 = vmul.f32 %v127, %v125
    %v129 = vadd.f32 %v120, %v128
    %s130 = sld [smem:[#allocation2 + $0x84]]
    %v131 = vstv %s130
    %v132 = vmul.f32 %v131, %v125
    %v133 = vadd.f32 %v124, %v132
    %s134 = sld [smem:[#allocation2 + $0x5]]
    %v135 = vstv %s134
    %v136 = vmul.f32 %v135, %v74
    %v137 = vmul.f32 %v135, %v75
    %v138 = vmul.f32 %v135, %v76
    %v139 = vmul.f32 %v135, %v77
    %v140 = vmul.f32 %v135, %v78
    %v141 = vmul.f32 %v135, %v79
    %v142 = vmul.f32 %v135, %v80
    %v143 = vmul.f32 %v135, %v81
    %v144 = vmul.f32 %v135, %v82
    %v145 = vmul.f32 %v135, %v83
    %v146 = vmul.f32 %v135, %v84
    %v147 = vmul.f32 %v135, %v85
    %v148 = vmul.f32 %v135, %v86
    %v149 = vmul.f32 %v135, %v87
    %v150 = vmul.f32 %v135, %v88
    %v151 = vmul.f32 %v135, %v89
    %v152 = vadd.f32 %v129, %v136
    %v153 = vadd.f32 %v129, %v137
    %v154 = vadd.f32 %v129, %v138
    %v155 = vadd.f32 %v129, %v139
    %v156 = vadd.f32 %v129, %v140
    %v157 = vadd.f32 %v129, %v141
    %v158 = vadd.f32 %v129, %v142
    %v159 = vadd.f32 %v129, %v143
    %v160 = vadd.f32 %v129, %v144
    %v161 = vadd.f32 %v129, %v145
    %v162 = vadd.f32 %v129, %v146
    %v163 = vadd.f32 %v129, %v147
    %v164 = vadd.f32 %v129, %v148
    %v165 = vadd.f32 %v129, %v149
    %v166 = vadd.f32 %v129, %v150
    %v167 = vadd.f32 %v129, %v151
    %s168 = sld [smem:[#allocation2 + $0x85]]
    %v169 = vstv %s168
    %v170 = vmul.f32 %v169, %v74
    %v171 = vmul.f32 %v169, %v75
    %v172 = vmul.f32 %v169, %v76
    %v173 = vmul.f32 %v169, %v77
    %v174 = vmul.f32 %v169, %v78
    %v175 = vmul.f32 %v169, %v79
    %v176 = vmul.f32 %v169, %v80
    %v177 = vmul.f32 %v169, %v81
    %v178 = vmul.f32 %v169, %v82
    %v179 = vmul.f32 %v169, %v83
    %v180 = vmul.f32 %v169, %v84
    %v181 = vmul.f32 %v169, %v85
    %v182 = vmul.f32 %v169, %v86
    %v183 = vmul.f32 %v169, %v87
    %v184 = vmul.f32 %v169, %v88
    %v185 = vmul.f32 %v169, %v89
    %v186 = vadd.f32 %v133, %v170
    %v187 = vadd.f32 %v133, %v171
    %v188 = vadd.f32 %v133, %v172
    %v189 = vadd.f32 %v133, %v173
    %v190 = vadd.f32 %v133, %v174
    %v191 = vadd.f32 %v133, %v175
    %v192 = vadd.f32 %v133, %v176
    %v193 = vadd.f32 %v133, %v177
    %v194 = vadd.f32 %v133, %v178
    %v195 = vadd.f32 %v133, %v179
    %v196 = vadd.f32 %v133, %v180
    %v197 = vadd.f32 %v133, %v181
    %v198 = vadd.f32 %v133, %v182
    %v199 = vadd.f32 %v133, %v183
    %v200 = vadd.f32 %v133, %v184
    %v201 = vadd.f32 %v133, %v185
    %v202 = vmul.f32 %v74, %v92
    %v203 = vmul.f32 %v75, %v92
    %v204 = vmul.f32 %v76, %v92
    %v205 = vmul.f32 %v77, %v92
    %v206 = vmul.f32 %v78, %v92
    %v207 = vmul.f32 %v79, %v92
    %v208 = vmul.f32 %v80, %v92
    %v209 = vmul.f32 %v81, %v92
    %v210 = vmul.f32 %v82, %v92
    %v211 = vmul.f32 %v83, %v92
    %v212 = vmul.f32 %v84, %v92
    %v213 = vmul.f32 %v85, %v92
    %v214 = vmul.f32 %v86, %v92
    %v215 = vmul.f32 %v87, %v92
    %v216 = vmul.f32 %v88, %v92
    %v217 = vmul.f32 %v89, %v92
    %s218 = sld [smem:[#allocation2 + $0x6]]
    %v219 = vstv %s218
    %v220 = vmul.f32 %v219, %v202
    %v221 = vmul.f32 %v219, %v203
    %v222 = vmul.f32 %v219, %v204
    %v223 = vmul.f32 %v219, %v205
    %v224 = vmul.f32 %v219, %v206
    %v225 = vmul.f32 %v219, %v207
    %v226 = vmul.f32 %v219, %v208
    %v227 = vmul.f32 %v219, %v209
    %v228 = vmul.f32 %v219, %v210
    %v229 = vmul.f32 %v219, %v211
    %v230 = vmul.f32 %v219, %v212
    %v231 = vmul.f32 %v219, %v213
    %v232 = vmul.f32 %v219, %v214
    %v233 = vmul.f32 %v219, %v215
    %v234 = vmul.f32 %v219, %v216
    %v235 = vmul.f32 %v219, %v217
    %v236 = vadd.f32 %v152, %v220
    %v237 = vadd.f32 %v153, %v221
    %v238 = vadd.f32 %v154, %v222
    %v239 = vadd.f32 %v155, %v223
    %v240 = vadd.f32 %v156, %v224
    %v241 = vadd.f32 %v157, %v225
    %v242 = vadd.f32 %v158, %v226
    %v243 = vadd.f32 %v159, %v227
    %v244 = vadd.f32 %v160, %v228
    %v245 = vadd.f32 %v161, %v229
    %v246 = vadd.f32 %v162, %v230
    %v247 = vadd.f32 %v163, %v231
    %v248 = vadd.f32 %v164, %v232
    %v249 = vadd.f32 %v165, %v233
    %v250 = vadd.f32 %v166, %v234
    %v251 = vadd.f32 %v167, %v235
    %s252 = sld [smem:[#allocation2 + $0x86]]
    %v253 = vstv %s252
    %v254 = vmul.f32 %v253, %v202
    %v255 = vmul.f32 %v253, %v203
    %v256 = vmul.f32 %v253, %v204
    %v257 = vmul.f32 %v253, %v205
    %v258 = vmul.f32 %v253, %v206
    %v259 = vmul.f32 %v253, %v207
    %v260 = vmul.f32 %v253, %v208
    %v261 = vmul.f32 %v253, %v209
    %v262 = vmul.f32 %v253, %v210
    %v263 = vmul.f32 %v253, %v211
    %v264 = vmul.f32 %v253, %v212
    %v265 = vmul.f32 %v253, %v213
    %v266 = vmul.f32 %v253, %v214
    %v267 = vmul.f32 %v253, %v215
    %v268 = vmul.f32 %v253, %v216
    %v269 = vmul.f32 %v253, %v217
    %v270 = vadd.f32 %v186, %v254
    %v271 = vadd.f32 %v187, %v255
    %v272 = vadd.f32 %v188, %v256
    %v273 = vadd.f32 %v189, %v257
    %v274 = vadd.f32 %v190, %v258
    %v275 = vadd.f32 %v191, %v259
    %v276 = vadd.f32 %v192, %v260
    %v277 = vadd.f32 %v193, %v261
    %v278 = vadd.f32 %v194, %v262
    %v279 = vadd.f32 %v195, %v263
    %v280 = vadd.f32 %v196, %v264
    %v281 = vadd.f32 %v197, %v265
    %v282 = vadd.f32 %v198, %v266
    %v283 = vadd.f32 %v199, %v267
    %v284 = vadd.f32 %v200, %v268
    %v285 = vadd.f32 %v201, %v269
    %v286 = vmul.f32 %v202, %v92
    %v287 = vmul.f32 %v203, %v92
    %v288 = vmul.f32 %v204, %v92
    %v289 = vmul.f32 %v205, %v92
    %v290 = vmul.f32 %v206, %v92
    %v291 = vmul.f32 %v207, %v92
    %v292 = vmul.f32 %v208, %v92
    %v293 = vmul.f32 %v209, %v92
    %v294 = vmul.f32 %v210, %v92
    %v295 = vmul.f32 %v211, %v92
    %v296 = vmul.f32 %v212, %v92
    %v297 = vmul.f32 %v213, %v92
    %v298 = vmul.f32 %v214, %v92
    %v299 = vmul.f32 %v215, %v92
    %v300 = vmul.f32 %v216, %v92
    %v301 = vmul.f32 %v217, %v92
    %s302 = sld [smem:[#allocation2 + $0x7]]
    %v303 = vstv %s302
    %v304 = vmul.f32 %v303, %v286
    %v305 = vmul.f32 %v303, %v287
    %v306 = vmul.f32 %v303, %v288
    %v307 = vmul.f32 %v303, %v289
    %v308 = vmul.f32 %v303, %v290
    %v309 = vmul.f32 %v303, %v291
    %v310 = vmul.f32 %v303, %v292
    %v311 = vmul.f32 %v303, %v293
    %v312 = vmul.f32 %v303, %v294
    %v313 = vmul.f32 %v303, %v295
    %v314 = vmul.f32 %v303, %v296
    %v315 = vmul.f32 %v303, %v297
    %v316 = vmul.f32 %v303, %v298
    %v317 = vmul.f32 %v303, %v299
    %v318 = vmul.f32 %v303, %v300
    %v319 = vmul.f32 %v303, %v301
    %v320 = vadd.f32 %v236, %v304
    %v321 = vadd.f32 %v237, %v305
    %v322 = vadd.f32 %v238, %v306
    %v323 = vadd.f32 %v239, %v307
    %v324 = vadd.f32 %v240, %v308
    %v325 = vadd.f32 %v241, %v309
    %v326 = vadd.f32 %v242, %v310
    %v327 = vadd.f32 %v243, %v311
    %v328 = vadd.f32 %v244, %v312
    %v329 = vadd.f32 %v245, %v313
    %v330 = vadd.f32 %v246, %v314
    %v331 = vadd.f32 %v247, %v315
    %v332 = vadd.f32 %v248, %v316
    %v333 = vadd.f32 %v249, %v317
    %v334 = vadd.f32 %v250, %v318
    %v335 = vadd.f32 %v251, %v319
    %s336 = sld [smem:[#allocation2 + $0x87]]
    %v337 = vstv %s336
    %v338 = vmul.f32 %v337, %v286
    %v339 = vmul.f32 %v337, %v287
    %v340 = vmul.f32 %v337, %v288
    %v341 = vmul.f32 %v337, %v289
    %v342 = vmul.f32 %v337, %v290
    %v343 = vmul.f32 %v337, %v291
    %v344 = vmul.f32 %v337, %v292
    %v345 = vmul.f32 %v337, %v293
    %v346 = vmul.f32 %v337, %v294
    %v347 = vmul.f32 %v337, %v295
    %v348 = vmul.f32 %v337, %v296
    %v349 = vmul.f32 %v337, %v297
    %v350 = vmul.f32 %v337, %v298
    %v351 = vmul.f32 %v337, %v299
    %v352 = vmul.f32 %v337, %v300
    %v353 = vmul.f32 %v337, %v301
    %v354 = vadd.f32 %v270, %v338
    %v355 = vadd.f32 %v271, %v339
    %v356 = vadd.f32 %v272, %v340
    %v357 = vadd.f32 %v273, %v341
    %v358 = vadd.f32 %v274, %v342
    %v359 = vadd.f32 %v275, %v343
    %v360 = vadd.f32 %v276, %v344
    %v361 = vadd.f32 %v277, %v345
    %v362 = vadd.f32 %v278, %v346
    %v363 = vadd.f32 %v279, %v347
    %v364 = vadd.f32 %v280, %v348
    %v365 = vadd.f32 %v281, %v349
    %v366 = vadd.f32 %v282, %v350
    %v367 = vadd.f32 %v283, %v351
    %v368 = vadd.f32 %v284, %v352
    %v369 = vadd.f32 %v285, %v353
    %v370 = vmul.f32 %v286, %v92
    %v371 = vmul.f32 %v287, %v92
    %v372 = vmul.f32 %v288, %v92
    %v373 = vmul.f32 %v289, %v92
    %v374 = vmul.f32 %v290, %v92
    %v375 = vmul.f32 %v291, %v92
    %v376 = vmul.f32 %v292, %v92
    %v377 = vmul.f32 %v293, %v92
    %v378 = vmul.f32 %v294, %v92
    %v379 = vmul.f32 %v295, %v92
    %v380 = vmul.f32 %v296, %v92
    %v381 = vmul.f32 %v297, %v92
    %v382 = vmul.f32 %v298, %v92
    %v383 = vmul.f32 %v299, %v92
    %v384 = vmul.f32 %v300, %v92
    %v385 = vmul.f32 %v301, %v92
    %s386 = sld [smem:[#allocation2 + $0x8]]
    %v387 = vstv %s386
    %v388 = vmul.f32 %v387, %v370
    %v389 = vmul.f32 %v387, %v371
    %v390 = vmul.f32 %v387, %v372
    %v391 = vmul.f32 %v387, %v373
    %v392 = vmul.f32 %v387, %v374
    %v393 = vmul.f32 %v387, %v375
    %v394 = vmul.f32 %v387, %v376
    %v395 = vmul.f32 %v387, %v377
    %v396 = vmul.f32 %v387, %v378
    %v397 = vmul.f32 %v387, %v379
    %v398 = vmul.f32 %v387, %v380
    %v399 = vmul.f32 %v387, %v381
    %v400 = vmul.f32 %v387, %v382
    %v401 = vmul.f32 %v387, %v383
    %v402 = vmul.f32 %v387, %v384
    %v403 = vmul.f32 %v387, %v385
    %v404 = vadd.f32 %v320, %v388
    %v405 = vadd.f32 %v321, %v389
    %v406 = vadd.f32 %v322, %v390
    %v407 = vadd.f32 %v323, %v391
    %v408 = vadd.f32 %v324, %v392
    %v409 = vadd.f32 %v325, %v393
    %v410 = vadd.f32 %v326, %v394
    %v411 = vadd.f32 %v327, %v395
    %v412 = vadd.f32 %v328, %v396
    %v413 = vadd.f32 %v329, %v397
    %v414 = vadd.f32 %v330, %v398
    %v415 = vadd.f32 %v331, %v399
    %v416 = vadd.f32 %v332, %v400
    %v417 = vadd.f32 %v333, %v401
    %v418 = vadd.f32 %v334, %v402
    %v419 = vadd.f32 %v335, %v403
    %s420 = sld [smem:[#allocation2 + $0x88]]
    %v421 = vstv %s420
    %v422 = vmul.f32 %v421, %v370
    %v423 = vmul.f32 %v421, %v371
    %v424 = vmul.f32 %v421, %v372
    %v425 = vmul.f32 %v421, %v373
    %v426 = vmul.f32 %v421, %v374
    %v427 = vmul.f32 %v421, %v375
    %v428 = vmul.f32 %v421, %v376
    %v429 = vmul.f32 %v421, %v377
    %v430 = vmul.f32 %v421, %v378
    %v431 = vmul.f32 %v421, %v379
    %v432 = vmul.f32 %v421, %v380
    %v433 = vmul.f32 %v421, %v381
    %v434 = vmul.f32 %v421, %v382
    %v435 = vmul.f32 %v421, %v383
    %v436 = vmul.f32 %v421, %v384
    %v437 = vmul.f32 %v421, %v385
    %v438 = vadd.f32 %v354, %v422
    %v439 = vadd.f32 %v355, %v423
    %v440 = vadd.f32 %v356, %v424
    %v441 = vadd.f32 %v357, %v425
    %v442 = vadd.f32 %v358, %v426
    %v443 = vadd.f32 %v359, %v427
    %v444 = vadd.f32 %v360, %v428
    %v445 = vadd.f32 %v361, %v429
    %v446 = vadd.f32 %v362, %v430
    %v447 = vadd.f32 %v363, %v431
    %v448 = vadd.f32 %v364, %v432
    %v449 = vadd.f32 %v365, %v433
    %v450 = vadd.f32 %v366, %v434
    %v451 = vadd.f32 %v367, %v435
    %v452 = vadd.f32 %v368, %v436
    %v453 = vadd.f32 %v369, %v437
    %v454 = vmul.f32 %v74, %v74
    %v455 = vmul.f32 %v75, %v75
    %v456 = vmul.f32 %v76, %v76
    %v457 = vmul.f32 %v77, %v77
    %v458 = vmul.f32 %v78, %v78
    %v459 = vmul.f32 %v79, %v79
    %v460 = vmul.f32 %v80, %v80
    %v461 = vmul.f32 %v81, %v81
    %v462 = vmul.f32 %v82, %v82
    %v463 = vmul.f32 %v83, %v83
    %v464 = vmul.f32 %v84, %v84
    %v465 = vmul.f32 %v85, %v85
    %v466 = vmul.f32 %v86, %v86
    %v467 = vmul.f32 %v87, %v87
    %v468 = vmul.f32 %v88, %v88
    %v469 = vmul.f32 %v89, %v89
    %s470 = sld [smem:[#allocation2 + $0x9]]
    %v471 = vstv %s470
    %v472 = vmul.f32 %v471, %v454
    %v473 = vmul.f32 %v471, %v455
    %v474 = vmul.f32 %v471, %v456
    %v475 = vmul.f32 %v471, %v457
    %v476 = vmul.f32 %v471, %v458
    %v477 = vmul.f32 %v471, %v459
    %v478 = vmul.f32 %v471, %v460
    %v479 = vmul.f32 %v471, %v461
    %v480 = vmul.f32 %v471, %v462
    %v481 = vmul.f32 %v471, %v463
    %v482 = vmul.f32 %v471, %v464
    %v483 = vmul.f32 %v471, %v465
    %v484 = vmul.f32 %v471, %v466
    %v485 = vmul.f32 %v471, %v467
    %v486 = vmul.f32 %v471, %v468
    %v487 = vmul.f32 %v471, %v469
    %v488 = vadd.f32 %v404, %v472
    %v489 = vadd.f32 %v405, %v473
    %v490 = vadd.f32 %v406, %v474
    %v491 = vadd.f32 %v407, %v475
    %v492 = vadd.f32 %v408, %v476
    %v493 = vadd.f32 %v409, %v477
    %v494 = vadd.f32 %v410, %v478
    %v495 = vadd.f32 %v411, %v479
    %v496 = vadd.f32 %v412, %v480
    %v497 = vadd.f32 %v413, %v481
    %v498 = vadd.f32 %v414, %v482
    %v499 = vadd.f32 %v415, %v483
    %v500 = vadd.f32 %v416, %v484
    %v501 = vadd.f32 %v417, %v485
    %v502 = vadd.f32 %v418, %v486
    %v503 = vadd.f32 %v419, %v487
    %s504 = sld [smem:[#allocation2 + $0x89]]
    %v505 = vstv %s504
    %v506 = vmul.f32 %v505, %v454
    %v507 = vmul.f32 %v505, %v455
    %v508 = vmul.f32 %v505, %v456
    %v509 = vmul.f32 %v505, %v457
    %v510 = vmul.f32 %v505, %v458
    %v511 = vmul.f32 %v505, %v459
    %v512 = vmul.f32 %v505, %v460
    %v513 = vmul.f32 %v505, %v461
    %v514 = vmul.f32 %v505, %v462
    %v515 = vmul.f32 %v505, %v463
    %v516 = vmul.f32 %v505, %v464
    %v517 = vmul.f32 %v505, %v465
    %v518 = vmul.f32 %v505, %v466
    %v519 = vmul.f32 %v505, %v467
    %v520 = vmul.f32 %v505, %v468
    %v521 = vmul.f32 %v505, %v469
    %v522 = vadd.f32 %v438, %v506
    %v523 = vadd.f32 %v439, %v507
    %v524 = vadd.f32 %v440, %v508
    %v525 = vadd.f32 %v441, %v509
    %v526 = vadd.f32 %v442, %v510
    %v527 = vadd.f32 %v443, %v511
    %v528 = vadd.f32 %v444, %v512
    %v529 = vadd.f32 %v445, %v513
    %v530 = vadd.f32 %v446, %v514
    %v531 = vadd.f32 %v447, %v515
    %v532 = vadd.f32 %v448, %v516
    %v533 = vadd.f32 %v449, %v517
    %v534 = vadd.f32 %v450, %v518
    %v535 = vadd.f32 %v451, %v519
    %v536 = vadd.f32 %v452, %v520
    %v537 = vadd.f32 %v453, %v521
    %v538 = vmul.f32 %v454, %v92
    %v539 = vmul.f32 %v455, %v92
    %v540 = vmul.f32 %v456, %v92
    %v541 = vmul.f32 %v457, %v92
    %v542 = vmul.f32 %v458, %v92
    %v543 = vmul.f32 %v459, %v92
    %v544 = vmul.f32 %v460, %v92
    %v545 = vmul.f32 %v461, %v92
    %v546 = vmul.f32 %v462, %v92
    %v547 = vmul.f32 %v463, %v92
    %v548 = vmul.f32 %v464, %v92
    %v549 = vmul.f32 %v465, %v92
    %v550 = vmul.f32 %v466, %v92
    %v551 = vmul.f32 %v467, %v92
    %v552 = vmul.f32 %v468, %v92
    %v553 = vmul.f32 %v469, %v92
    %s554 = sld [smem:[#allocation2 + $0xa]]
    %v555 = vstv %s554
    %v556 = vmul.f32 %v555, %v538
    %v557 = vmul.f32 %v555, %v539
    %v558 = vmul.f32 %v555, %v540
    %v559 = vmul.f32 %v555, %v541
    %v560 = vmul.f32 %v555, %v542
    %v561 = vmul.f32 %v555, %v543
    %v562 = vmul.f32 %v555, %v544
    %v563 = vmul.f32 %v555, %v545
    %v564 = vmul.f32 %v555, %v546
    %v565 = vmul.f32 %v555, %v547
    %v566 = vmul.f32 %v555, %v548
    %v567 = vmul.f32 %v555, %v549
    %v568 = vmul.f32 %v555, %v550
    %v569 = vmul.f32 %v555, %v551
    %v570 = vmul.f32 %v555, %v552
    %v571 = vmul.f32 %v555, %v553
    %v572 = vadd.f32 %v488, %v556
    %v573 = vadd.f32 %v489, %v557
    %v574 = vadd.f32 %v490, %v558
    %v575 = vadd.f32 %v491, %v559
    %v576 = vadd.f32 %v492, %v560
    %v577 = vadd.f32 %v493, %v561
    %v578 = vadd.f32 %v494, %v562
    %v579 = vadd.f32 %v495, %v563
    %v580 = vadd.f32 %v496, %v564
    %v581 = vadd.f32 %v497, %v565
    %v582 = vadd.f32 %v498, %v566
    %v583 = vadd.f32 %v499, %v567
    %v584 = vadd.f32 %v500, %v568
    %v585 = vadd.f32 %v501, %v569
    %v586 = vadd.f32 %v502, %v570
    %v587 = vadd.f32 %v503, %v571
    %s588 = sld [smem:[#allocation2 + $0x8a]]
    %v589 = vstv %s588
    %v590 = vmul.f32 %v589, %v538
    %v591 = vmul.f32 %v589, %v539
    %v592 = vmul.f32 %v589, %v540
    %v593 = vmul.f32 %v589, %v541
    %v594 = vmul.f32 %v589, %v542
    %v595 = vmul.f32 %v589, %v543
    %v596 = vmul.f32 %v589, %v544
    %v597 = vmul.f32 %v589, %v545
    %v598 = vmul.f32 %v589, %v546
    %v599 = vmul.f32 %v589, %v547
    %v600 = vmul.f32 %v589, %v548
    %v601 = vmul.f32 %v589, %v549
    %v602 = vmul.f32 %v589, %v550
    %v603 = vmul.f32 %v589, %v551
    %v604 = vmul.f32 %v589, %v552
    %v605 = vmul.f32 %v589, %v553
    %v606 = vadd.f32 %v522, %v590
    %v607 = vadd.f32 %v523, %v591
    %v608 = vadd.f32 %v524, %v592
    %v609 = vadd.f32 %v525, %v593
    %v610 = vadd.f32 %v526, %v594
    %v611 = vadd.f32 %v527, %v595
    %v612 = vadd.f32 %v528, %v596
    %v613 = vadd.f32 %v529, %v597
    %v614 = vadd.f32 %v530, %v598
    %v615 = vadd.f32 %v531, %v599
    %v616 = vadd.f32 %v532, %v600
    %v617 = vadd.f32 %v533, %v601
    %v618 = vadd.f32 %v534, %v602
    %v619 = vadd.f32 %v535, %v603
    %v620 = vadd.f32 %v536, %v604
    %v621 = vadd.f32 %v537, %v605
    %v622 = vmul.f32 %v538, %v92
    %v623 = vmul.f32 %v539, %v92
    %v624 = vmul.f32 %v540, %v92
    %v625 = vmul.f32 %v541, %v92
    %v626 = vmul.f32 %v542, %v92
    %v627 = vmul.f32 %v543, %v92
    %v628 = vmul.f32 %v544, %v92
    %v629 = vmul.f32 %v545, %v92
    %v630 = vmul.f32 %v546, %v92
    %v631 = vmul.f32 %v547, %v92
    %v632 = vmul.f32 %v548, %v92
    %v633 = vmul.f32 %v549, %v92
    %v634 = vmul.f32 %v550, %v92
    %v635 = vmul.f32 %v551, %v92
    %v636 = vmul.f32 %v552, %v92
    %v637 = vmul.f32 %v553, %v92
    %s638 = sld [smem:[#allocation2 + $0xb]]
    %v639 = vstv %s638
    %v640 = vmul.f32 %v639, %v622
    %v641 = vmul.f32 %v639, %v623
    %v642 = vmul.f32 %v639, %v624
    %v643 = vmul.f32 %v639, %v625
    %v644 = vmul.f32 %v639, %v626
    %v645 = vmul.f32 %v639, %v627
    %v646 = vmul.f32 %v639, %v628
    %v647 = vmul.f32 %v639, %v629
    %v648 = vmul.f32 %v639, %v630
    %v649 = vmul.f32 %v639, %v631
    %v650 = vmul.f32 %v639, %v632
    %v651 = vmul.f32 %v639, %v633
    %v652 = vmul.f32 %v639, %v634
    %v653 = vmul.f32 %v639, %v635
    %v654 = vmul.f32 %v639, %v636
    %v655 = vmul.f32 %v639, %v637
    %v656 = vadd.f32 %v572, %v640
    %v657 = vadd.f32 %v573, %v641
    %v658 = vadd.f32 %v574, %v642
    %v659 = vadd.f32 %v575, %v643
    %v660 = vadd.f32 %v576, %v644
    %v661 = vadd.f32 %v577, %v645
    %v662 = vadd.f32 %v578, %v646
    %v663 = vadd.f32 %v579, %v647
    %v664 = vadd.f32 %v580, %v648
    %v665 = vadd.f32 %v581, %v649
    %v666 = vadd.f32 %v582, %v650
    %v667 = vadd.f32 %v583, %v651
    %v668 = vadd.f32 %v584, %v652
    %v669 = vadd.f32 %v585, %v653
    %v670 = vadd.f32 %v586, %v654
    %v671 = vadd.f32 %v587, %v655
    %s672 = sld [smem:[#allocation2 + $0x8b]]
    %v673 = vstv %s672
    %v674 = vmul.f32 %v673, %v622
    %v675 = vmul.f32 %v673, %v623
    %v676 = vmul.f32 %v673, %v624
    %v677 = vmul.f32 %v673, %v625
    %v678 = vmul.f32 %v673, %v626
    %v679 = vmul.f32 %v673, %v627
    %v680 = vmul.f32 %v673, %v628
    %v681 = vmul.f32 %v673, %v629
    %v682 = vmul.f32 %v673, %v630
    %v683 = vmul.f32 %v673, %v631
    %v684 = vmul.f32 %v673, %v632
    %v685 = vmul.f32 %v673, %v633
    %v686 = vmul.f32 %v673, %v634
    %v687 = vmul.f32 %v673, %v635
    %v688 = vmul.f32 %v673, %v636
    %v689 = vmul.f32 %v673, %v637
    %v690 = vadd.f32 %v606, %v674
    %v691 = vadd.f32 %v607, %v675
    %v692 = vadd.f32 %v608, %v676
    %v693 = vadd.f32 %v609, %v677
    %v694 = vadd.f32 %v610, %v678
    %v695 = vadd.f32 %v611, %v679
    %v696 = vadd.f32 %v612, %v680
    %v697 = vadd.f32 %v613, %v681
    %v698 = vadd.f32 %v614, %v682
    %v699 = vadd.f32 %v615, %v683
    %v700 = vadd.f32 %v616, %v684
    %v701 = vadd.f32 %v617, %v685
    %v702 = vadd.f32 %v618, %v686
    %v703 = vadd.f32 %v619, %v687
    %v704 = vadd.f32 %v620, %v688
    %v705 = vadd.f32 %v621, %v689
    %v706 = vmul.f32 %v454, %v74
    %v707 = vmul.f32 %v455, %v75
    %v708 = vmul.f32 %v456, %v76
    %v709 = vmul.f32 %v457, %v77
    %v710 = vmul.f32 %v458, %v78
    %v711 = vmul.f32 %v459, %v79
    %v712 = vmul.f32 %v460, %v80
    %v713 = vmul.f32 %v461, %v81
    %v714 = vmul.f32 %v462, %v82
    %v715 = vmul.f32 %v463, %v83
    %v716 = vmul.f32 %v464, %v84
    %v717 = vmul.f32 %v465, %v85
    %v718 = vmul.f32 %v466, %v86
    %v719 = vmul.f32 %v467, %v87
    %v720 = vmul.f32 %v468, %v88
    %v721 = vmul.f32 %v469, %v89
    %s722 = sld [smem:[#allocation2 + $0xc]]
    %v723 = vstv %s722
    %v724 = vmul.f32 %v723, %v706
    %v725 = vmul.f32 %v723, %v707
    %v726 = vmul.f32 %v723, %v708
    %v727 = vmul.f32 %v723, %v709
    %v728 = vmul.f32 %v723, %v710
    %v729 = vmul.f32 %v723, %v711
    %v730 = vmul.f32 %v723, %v712
    %v731 = vmul.f32 %v723, %v713
    %v732 = vmul.f32 %v723, %v714
    %v733 = vmul.f32 %v723, %v715
    %v734 = vmul.f32 %v723, %v716
    %v735 = vmul.f32 %v723, %v717
    %v736 = vmul.f32 %v723, %v718
    %v737 = vmul.f32 %v723, %v719
    %v738 = vmul.f32 %v723, %v720
    %v739 = vmul.f32 %v723, %v721
    %v740 = vadd.f32 %v656, %v724
    %v741 = vadd.f32 %v657, %v725
    %v742 = vadd.f32 %v658, %v726
    %v743 = vadd.f32 %v659, %v727
    %v744 = vadd.f32 %v660, %v728
    %v745 = vadd.f32 %v661, %v729
    %v746 = vadd.f32 %v662, %v730
    %v747 = vadd.f32 %v663, %v731
    %v748 = vadd.f32 %v664, %v732
    %v749 = vadd.f32 %v665, %v733
    %v750 = vadd.f32 %v666, %v734
    %v751 = vadd.f32 %v667, %v735
    %v752 = vadd.f32 %v668, %v736
    %v753 = vadd.f32 %v669, %v737
    %v754 = vadd.f32 %v670, %v738
    %v755 = vadd.f32 %v671, %v739
    %s756 = sld [smem:[#allocation2 + $0x8c]]
    %v757 = vstv %s756
    %v758 = vmul.f32 %v757, %v706
    %v759 = vmul.f32 %v757, %v707
    %v760 = vmul.f32 %v757, %v708
    %v761 = vmul.f32 %v757, %v709
    %v762 = vmul.f32 %v757, %v710
    %v763 = vmul.f32 %v757, %v711
    %v764 = vmul.f32 %v757, %v712
    %v765 = vmul.f32 %v757, %v713
    %v766 = vmul.f32 %v757, %v714
    %v767 = vmul.f32 %v757, %v715
    %v768 = vmul.f32 %v757, %v716
    %v769 = vmul.f32 %v757, %v717
    %v770 = vmul.f32 %v757, %v718
    %v771 = vmul.f32 %v757, %v719
    %v772 = vmul.f32 %v757, %v720
    %v773 = vmul.f32 %v757, %v721
    %v774 = vadd.f32 %v690, %v758
    %v775 = vadd.f32 %v691, %v759
    %v776 = vadd.f32 %v692, %v760
    %v777 = vadd.f32 %v693, %v761
    %v778 = vadd.f32 %v694, %v762
    %v779 = vadd.f32 %v695, %v763
    %v780 = vadd.f32 %v696, %v764
    %v781 = vadd.f32 %v697, %v765
    %v782 = vadd.f32 %v698, %v766
    %v783 = vadd.f32 %v699, %v767
    %v784 = vadd.f32 %v700, %v768
    %v785 = vadd.f32 %v701, %v769
    %v786 = vadd.f32 %v702, %v770
    %v787 = vadd.f32 %v703, %v771
    %v788 = vadd.f32 %v704, %v772
    %v789 = vadd.f32 %v705, %v773
    %v790 = vmul.f32 %v706, %v92
    %v791 = vmul.f32 %v707, %v92
    %v792 = vmul.f32 %v708, %v92
    %v793 = vmul.f32 %v709, %v92
    %v794 = vmul.f32 %v710, %v92
    %v795 = vmul.f32 %v711, %v92
    %v796 = vmul.f32 %v712, %v92
    %v797 = vmul.f32 %v713, %v92
    %v798 = vmul.f32 %v714, %v92
    %v799 = vmul.f32 %v715, %v92
    %v800 = vmul.f32 %v716, %v92
    %v801 = vmul.f32 %v717, %v92
    %v802 = vmul.f32 %v718, %v92
    %v803 = vmul.f32 %v719, %v92
    %v804 = vmul.f32 %v720, %v92
    %v805 = vmul.f32 %v721, %v92
    %s806 = sld [smem:[#allocation2 + $0xd]]
    %v807 = vstv %s806
    %v808 = vmul.f32 %v807, %v790
    %v809 = vmul.f32 %v807, %v791
    %v810 = vmul.f32 %v807, %v792
    %v811 = vmul.f32 %v807, %v793
    %v812 = vmul.f32 %v807, %v794
    %v813 = vmul.f32 %v807, %v795
    %v814 = vmul.f32 %v807, %v796
    %v815 = vmul.f32 %v807, %v797
    %v816 = vmul.f32 %v807, %v798
    %v817 = vmul.f32 %v807, %v799
    %v818 = vmul.f32 %v807, %v800
    %v819 = vmul.f32 %v807, %v801
    %v820 = vmul.f32 %v807, %v802
    %v821 = vmul.f32 %v807, %v803
    %v822 = vmul.f32 %v807, %v804
    %v823 = vmul.f32 %v807, %v805
    %v824 = vadd.f32 %v740, %v808
    %v825 = vadd.f32 %v741, %v809
    %v826 = vadd.f32 %v742, %v810
    %v827 = vadd.f32 %v743, %v811
    %v828 = vadd.f32 %v744, %v812
    %v829 = vadd.f32 %v745, %v813
    %v830 = vadd.f32 %v746, %v814
    %v831 = vadd.f32 %v747, %v815
    %v832 = vadd.f32 %v748, %v816
    %v833 = vadd.f32 %v749, %v817
    %v834 = vadd.f32 %v750, %v818
    %v835 = vadd.f32 %v751, %v819
    %v836 = vadd.f32 %v752, %v820
    %v837 = vadd.f32 %v753, %v821
    %v838 = vadd.f32 %v754, %v822
    %v839 = vadd.f32 %v755, %v823
    %s840 = sld [smem:[#allocation2 + $0x8d]]
    %v841 = vstv %s840
    %v842 = vmul.f32 %v841, %v790
    %v843 = vmul.f32 %v841, %v791
    %v844 = vmul.f32 %v841, %v792
    %v845 = vmul.f32 %v841, %v793
    %v846 = vmul.f32 %v841, %v794
    %v847 = vmul.f32 %v841, %v795
    %v848 = vmul.f32 %v841, %v796
    %v849 = vmul.f32 %v841, %v797
    %v850 = vmul.f32 %v841, %v798
    %v851 = vmul.f32 %v841, %v799
    %v852 = vmul.f32 %v841, %v800
    %v853 = vmul.f32 %v841, %v801
    %v854 = vmul.f32 %v841, %v802
    %v855 = vmul.f32 %v841, %v803
    %v856 = vmul.f32 %v841, %v804
    %v857 = vmul.f32 %v841, %v805
    %v858 = vadd.f32 %v774, %v842
    %v859 = vadd.f32 %v775, %v843
    %v860 = vadd.f32 %v776, %v844
    %v861 = vadd.f32 %v777, %v845
    %v862 = vadd.f32 %v778, %v846
    %v863 = vadd.f32 %v779, %v847
    %v864 = vadd.f32 %v780, %v848
    %v865 = vadd.f32 %v781, %v849
    %v866 = vadd.f32 %v782, %v850
    %v867 = vadd.f32 %v783, %v851
    %v868 = vadd.f32 %v784, %v852
    %v869 = vadd.f32 %v785, %v853
    %v870 = vadd.f32 %v786, %v854
    %v871 = vadd.f32 %v787, %v855
    %v872 = vadd.f32 %v788, %v856
    %v873 = vadd.f32 %v789, %v857
    %v874 = vmul.f32 %v706, %v74
    %v875 = vmul.f32 %v707, %v75
    %v876 = vmul.f32 %v708, %v76
    %v877 = vmul.f32 %v709, %v77
    %v878 = vmul.f32 %v710, %v78
    %v879 = vmul.f32 %v711, %v79
    %v880 = vmul.f32 %v712, %v80
    %v881 = vmul.f32 %v713, %v81
    %v882 = vmul.f32 %v714, %v82
    %v883 = vmul.f32 %v715, %v83
    %v884 = vmul.f32 %v716, %v84
    %v885 = vmul.f32 %v717, %v85
    %v886 = vmul.f32 %v718, %v86
    %v887 = vmul.f32 %v719, %v87
    %v888 = vmul.f32 %v720, %v88
    %v889 = vmul.f32 %v721, %v89
    %s890 = sld [smem:[#allocation2 + $0xe]]
    %v891 = vstv %s890
    %v892 = vmul.f32 %v891, %v874
    %v893 = vmul.f32 %v891, %v875
    %v894 = vmul.f32 %v891, %v876
    %v895 = vmul.f32 %v891, %v877
    %v896 = vmul.f32 %v891, %v878
    %v897 = vmul.f32 %v891, %v879
    %v898 = vmul.f32 %v891, %v880
    %v899 = vmul.f32 %v891, %v881
    %v900 = vmul.f32 %v891, %v882
    %v901 = vmul.f32 %v891, %v883
    %v902 = vmul.f32 %v891, %v884
    %v903 = vmul.f32 %v891, %v885
    %v904 = vmul.f32 %v891, %v886
    %v905 = vmul.f32 %v891, %v887
    %v906 = vmul.f32 %v891, %v888
    %v907 = vmul.f32 %v891, %v889
    %v908 = vadd.f32 %v824, %v892
    %v909 = vadd.f32 %v825, %v893
    %v910 = vadd.f32 %v826, %v894
    %v911 = vadd.f32 %v827, %v895
    %v912 = vadd.f32 %v828, %v896
    %v913 = vadd.f32 %v829, %v897
    %v914 = vadd.f32 %v830, %v898
    %v915 = vadd.f32 %v831, %v899
    %v916 = vadd.f32 %v832, %v900
    %v917 = vadd.f32 %v833, %v901
    %v918 = vadd.f32 %v834, %v902
    %v919 = vadd.f32 %v835, %v903
    %v920 = vadd.f32 %v836, %v904
    %v921 = vadd.f32 %v837, %v905
    %v922 = vadd.f32 %v838, %v906
    %v923 = vadd.f32 %v839, %v907
    %s924 = sld [smem:[#allocation2 + $0x8e]]
    %v925 = vstv %s924
    %v926 = vmul.f32 %v925, %v874
    %v927 = vmul.f32 %v925, %v875
    %v928 = vmul.f32 %v925, %v876
    %v929 = vmul.f32 %v925, %v877
    %v930 = vmul.f32 %v925, %v878
    %v931 = vmul.f32 %v925, %v879
    %v932 = vmul.f32 %v925, %v880
    %v933 = vmul.f32 %v925, %v881
    %v934 = vmul.f32 %v925, %v882
    %v935 = vmul.f32 %v925, %v883
    %v936 = vmul.f32 %v925, %v884
    %v937 = vmul.f32 %v925, %v885
    %v938 = vmul.f32 %v925, %v886
    %v939 = vmul.f32 %v925, %v887
    %v940 = vmul.f32 %v925, %v888
    %v941 = vmul.f32 %v925, %v889
    %v942 = vadd.f32 %v858, %v926
    %v943 = vadd.f32 %v859, %v927
    %v944 = vadd.f32 %v860, %v928
    %v945 = vadd.f32 %v861, %v929
    %v946 = vadd.f32 %v862, %v930
    %v947 = vadd.f32 %v863, %v931
    %v948 = vadd.f32 %v864, %v932
    %v949 = vadd.f32 %v865, %v933
    %v950 = vadd.f32 %v866, %v934
    %v951 = vadd.f32 %v867, %v935
    %v952 = vadd.f32 %v868, %v936
    %v953 = vadd.f32 %v869, %v937
    %v954 = vadd.f32 %v870, %v938
    %v955 = vadd.f32 %v871, %v939
    %v956 = vadd.f32 %v872, %v940
    %v957 = vadd.f32 %v873, %v941
    %v958 = vxor.u32 %v908, 2147483648
    %v959 = vxor.u32 %v909, 2147483648
    %v960 = vxor.u32 %v910, 2147483648
    %v961 = vxor.u32 %v911, 2147483648
    %v962 = vxor.u32 %v912, 2147483648
    %v963 = vxor.u32 %v913, 2147483648
    %v964 = vxor.u32 %v914, 2147483648
    %v965 = vxor.u32 %v915, 2147483648
    %v966 = vxor.u32 %v916, 2147483648
    %v967 = vxor.u32 %v917, 2147483648
    %v968 = vxor.u32 %v918, 2147483648
    %v969 = vxor.u32 %v919, 2147483648
    %v970 = vxor.u32 %v920, 2147483648
    %v971 = vxor.u32 %v921, 2147483648
    %v972 = vxor.u32 %v922, 2147483648
    %v973 = vxor.u32 %v923, 2147483648
    %v974 = vmul.f32 %v958, 1.442695
    %v975 = vpow.pop %v974
    %v976 = vmul.f32 %v959, 1.442695
    %v977 = vpow.pop %v976
    %v978 = vmul.f32 %v960, 1.442695
    %v979 = vpow.pop %v978
    %v980 = vmul.f32 %v961, 1.442695
    %v981 = vpow.pop %v980
    %v982 = vmul.f32 %v962, 1.442695
    %v983 = vpow.pop %v982
    %v984 = vmul.f32 %v963, 1.442695
    %v985 = vpow.pop %v984
    %v986 = vmul.f32 %v964, 1.442695
    %v987 = vpow.pop %v986
    %v988 = vmul.f32 %v965, 1.442695
    %v989 = vpow.pop %v988
    %v990 = vmul.f32 %v966, 1.442695
    %v991 = vpow.pop %v990
    %v992 = vmul.f32 %v967, 1.442695
    %v993 = vpow.pop %v992
    %v994 = vmul.f32 %v968, 1.442695
    %v995 = vpow.pop %v994
    %v996 = vmul.f32 %v969, 1.442695
    %v997 = vpow.pop %v996
    %v998 = vmul.f32 %v970, 1.442695
    %v999 = vpow.pop %v998
    %v1000 = vmul.f32 %v971, 1.442695
    %v1001 = vpow.pop %v1000
    %v1002 = vmul.f32 %v972, 1.442695
    %v1003 = vpow.pop %v1002
    %v1004 = vmul.f32 %v973, 1.442695
    %v1005 = vpow.pop %v1004
    %v1006 = vadd.f32 %v975, 1.0
    %v1007 = vadd.f32 %v977, 1.0
    %v1008 = vadd.f32 %v979, 1.0
    %v1009 = vadd.f32 %v981, 1.0
    %v1010 = vadd.f32 %v983, 1.0
    %v1011 = vadd.f32 %v985, 1.0
    %v1012 = vadd.f32 %v987, 1.0
    %v1013 = vadd.f32 %v989, 1.0
    %v1014 = vadd.f32 %v991, 1.0
    %v1015 = vadd.f32 %v993, 1.0
    %v1016 = vadd.f32 %v995, 1.0
    %v1017 = vadd.f32 %v997, 1.0
    %v1018 = vadd.f32 %v999, 1.0
    %v1019 = vadd.f32 %v1001, 1.0
    %v1020 = vadd.f32 %v1003, 1.0
    %v1021 = vadd.f32 %v1005, 1.0
    %v1022 = vrcp.pop %v1006
    %v1023 = vmul.f32 1.0, %v1022
    %v1024 = vrcp.pop %v1007
    %v1025 = vmul.f32 1.0, %v1024
    %v1026 = vrcp.pop %v1008
    %v1027 = vmul.f32 1.0, %v1026
    %v1028 = vrcp.pop %v1009
    %v1029 = vmul.f32 1.0, %v1028
    %v1030 = vrcp.pop %v1010
    %v1031 = vmul.f32 1.0, %v1030
    %v1032 = vrcp.pop %v1011
    %v1033 = vmul.f32 1.0, %v1032
    %v1034 = vrcp.pop %v1012
    %v1035 = vmul.f32 1.0, %v1034
    %v1036 = vrcp.pop %v1013
    %v1037 = vmul.f32 1.0, %v1036
    %v1038 = vrcp.pop %v1014
    %v1039 = vmul.f32 1.0, %v1038
    %v1040 = vrcp.pop %v1015
    %v1041 = vmul.f32 1.0, %v1040
    %v1042 = vrcp.pop %v1016
    %v1043 = vmul.f32 1.0, %v1042
    %v1044 = vrcp.pop %v1017
    %v1045 = vmul.f32 1.0, %v1044
    %v1046 = vrcp.pop %v1018
    %v1047 = vmul.f32 1.0, %v1046
    %v1048 = vrcp.pop %v1019
    %v1049 = vmul.f32 1.0, %v1048
    %v1050 = vrcp.pop %v1020
    %v1051 = vmul.f32 1.0, %v1050
    %v1052 = vrcp.pop %v1021
    %v1053 = vmul.f32 1.0, %v1052
    %1054 = vst [vmem:[#allocation5] sm:$0xff] %v1023
    %1055 = vst [vmem:[#allocation5 + $0x8] sm:$0xff] %v1025
    %1056 = vst [vmem:[#allocation5 + $0x10] sm:$0xff] %v1027
    %1057 = vst [vmem:[#allocation5 + $0x18] sm:$0xff] %v1029
    %1058 = vst [vmem:[#allocation5 + $0x20] sm:$0xff] %v1031
    %1059 = vst [vmem:[#allocation5 + $0x28] sm:$0xff] %v1033
    %1060 = vst [vmem:[#allocation5 + $0x30] sm:$0xff] %v1035
    %1061 = vst [vmem:[#allocation5 + $0x38] sm:$0xff] %v1037
    %1062 = vst [vmem:[#allocation5 + $0x40] sm:$0xff] %v1039
    %1063 = vst [vmem:[#allocation5 + $0x48] sm:$0xff] %v1041
    %1064 = vst [vmem:[#allocation5 + $0x50] sm:$0xff] %v1043
    %1065 = vst [vmem:[#allocation5 + $0x58] sm:$0xff] %v1045
    %1066 = vst [vmem:[#allocation5 + $0x60] sm:$0xff] %v1047
    %1067 = vst [vmem:[#allocation5 + $0x68] sm:$0xff] %v1049
    %1068 = vst [vmem:[#allocation5 + $0x70] sm:$0xff] %v1051
    %1069 = vst [vmem:[#allocation5 + $0x78] sm:$0xff] %v1053
    %v1070 = vxor.u32 %v942, 2147483648
    %v1071 = vxor.u32 %v943, 2147483648
    %v1072 = vxor.u32 %v944, 2147483648
    %v1073 = vxor.u32 %v945, 2147483648
    %v1074 = vxor.u32 %v946, 2147483648
    %v1075 = vxor.u32 %v947, 2147483648
    %v1076 = vxor.u32 %v948, 2147483648
    %v1077 = vxor.u32 %v949, 2147483648
    %v1078 = vxor.u32 %v950, 2147483648
    %v1079 = vxor.u32 %v951, 2147483648
    %v1080 = vxor.u32 %v952, 2147483648
    %v1081 = vxor.u32 %v953, 2147483648
    %v1082 = vxor.u32 %v954, 2147483648
    %v1083 = vxor.u32 %v955, 2147483648
    %v1084 = vxor.u32 %v956, 2147483648
    %v1085 = vxor.u32 %v957, 2147483648
    %v1086 = vmul.f32 %v1070, 1.442695
    %v1087 = vpow.pop %v1086
    %v1088 = vmul.f32 %v1071, 1.442695
    %v1089 = vpow.pop %v1088
    %v1090 = vmul.f32 %v1072, 1.442695
    %v1091 = vpow.pop %v1090
    %v1092 = vmul.f32 %v1073, 1.442695
    %v1093 = vpow.pop %v1092
    %v1094 = vmul.f32 %v1074, 1.442695
    %v1095 = vpow.pop %v1094
    %v1096 = vmul.f32 %v1075, 1.442695
    %v1097 = vpow.pop %v1096
    %v1098 = vmul.f32 %v1076, 1.442695
    %v1099 = vpow.pop %v1098
    %v1100 = vmul.f32 %v1077, 1.442695
    %v1101 = vpow.pop %v1100
    %v1102 = vmul.f32 %v1078, 1.442695
    %v1103 = vpow.pop %v1102
    %v1104 = vmul.f32 %v1079, 1.442695
    %v1105 = vpow.pop %v1104
    %v1106 = vmul.f32 %v1080, 1.442695
    %v1107 = vpow.pop %v1106
    %v1108 = vmul.f32 %v1081, 1.442695
    %v1109 = vpow.pop %v1108
    %v1110 = vmul.f32 %v1082, 1.442695
    %v1111 = vpow.pop %v1110
    %v1112 = vmul.f32 %v1083, 1.442695
    %v1113 = vpow.pop %v1112
    %v1114 = vmul.f32 %v1084, 1.442695
    %v1115 = vpow.pop %v1114
    %v1116 = vmul.f32 %v1085, 1.442695
    %v1117 = vpow.pop %v1116
    %v1118 = vadd.f32 %v1087, 1.0
    %v1119 = vadd.f32 %v1089, 1.0
    %v1120 = vadd.f32 %v1091, 1.0
    %v1121 = vadd.f32 %v1093, 1.0
    %v1122 = vadd.f32 %v1095, 1.0
    %v1123 = vadd.f32 %v1097, 1.0
    %v1124 = vadd.f32 %v1099, 1.0
    %v1125 = vadd.f32 %v1101, 1.0
    %v1126 = vadd.f32 %v1103, 1.0
    %v1127 = vadd.f32 %v1105, 1.0
    %v1128 = vadd.f32 %v1107, 1.0
    %v1129 = vadd.f32 %v1109, 1.0
    %v1130 = vadd.f32 %v1111, 1.0
    %v1131 = vadd.f32 %v1113, 1.0
    %v1132 = vadd.f32 %v1115, 1.0
    %v1133 = vadd.f32 %v1117, 1.0
    %v1134 = vrcp.pop %v1118
    %v1135 = vmul.f32 1.0, %v1134
    %v1136 = vrcp.pop %v1119
    %v1137 = vmul.f32 1.0, %v1136
    %v1138 = vrcp.pop %v1120
    %v1139 = vmul.f32 1.0, %v1138
    %v1140 = vrcp.pop %v1121
    %v1141 = vmul.f32 1.0, %v1140
    %v1142 = vrcp.pop %v1122
    %v1143 = vmul.f32 1.0, %v1142
    %v1144 = vrcp.pop %v1123
    %v1145 = vmul.f32 1.0, %v1144
    %v1146 = vrcp.pop %v1124
    %v1147 = vmul.f32 1.0, %v1146
    %v1148 = vrcp.pop %v1125
    %v1149 = vmul.f32 1.0, %v1148
    %v1150 = vrcp.pop %v1126
    %v1151 = vmul.f32 1.0, %v1150
    %v1152 = vrcp.pop %v1127
    %v1153 = vmul.f32 1.0, %v1152
    %v1154 = vrcp.pop %v1128
    %v1155 = vmul.f32 1.0, %v1154
    %v1156 = vrcp.pop %v1129
    %v1157 = vmul.f32 1.0, %v1156
    %v1158 = vrcp.pop %v1130
    %v1159 = vmul.f32 1.0, %v1158
    %v1160 = vrcp.pop %v1131
    %v1161 = vmul.f32 1.0, %v1160
    %v1162 = vrcp.pop %v1132
    %v1163 = vmul.f32 1.0, %v1162
    %v1164 = vrcp.pop %v1133
    %v1165 = vmul.f32 1.0, %v1164
    %1166 = vst [vmem:[#allocation5 + $0x80] sm:$0xff] %v1135
    %1167 = vst [vmem:[#allocation5 + $0x88] sm:$0xff] %v1137
    %1168 = vst [vmem:[#allocation5 + $0x90] sm:$0xff] %v1139
    %1169 = vst [vmem:[#allocation5 + $0x98] sm:$0xff] %v1141
    %1170 = vst [vmem:[#allocation5 + $0xa0] sm:$0xff] %v1143
    %1171 = vst [vmem:[#allocation5 + $0xa8] sm:$0xff] %v1145
    %1172 = vst [vmem:[#allocation5 + $0xb0] sm:$0xff] %v1147
    %1173 = vst [vmem:[#allocation5 + $0xb8] sm:$0xff] %v1149
    %1174 = vst [vmem:[#allocation5 + $0xc0] sm:$0xff] %v1151
    %1175 = vst [vmem:[#allocation5 + $0xc8] sm:$0xff] %v1153
    %1176 = vst [vmem:[#allocation5 + $0xd0] sm:$0xff] %v1155
    %1177 = vst [vmem:[#allocation5 + $0xd8] sm:$0xff] %v1157
    %1178 = vst [vmem:[#allocation5 + $0xe0] sm:$0xff] %v1159
    %1179 = vst [vmem:[#allocation5 + $0xe8] sm:$0xff] %v1161
    %1180 = vst [vmem:[#allocation5 + $0xf0] sm:$0xff] %v1163
    %1181 = vst [vmem:[#allocation5 + $0xf8] sm:$0xff] %v1165
    // Predicated region
    $region10: #{solo_generator.1} parent=1 // pred_check
      _
    $region11: #{solo_generator.1} parent=1 // pred_check_branch
      %1183 = sbr.rel (0) target = $region13
    $region12: #{solo_generator.1} parent=1 // pred_region
      %s1185 = ssub.s32 4096, 4096
      %1186 = vsyncadd [#allocation3], %s1185
      %s1187 = sshll.u32 [#allocation5], 4
      %s1188 = int_to_ptr.vmem [resolvable:$true] %s1187
      %1193 = dma.vmem_to_hbm [thread:$0]  %s1188, 4096, %s1, [#allocation3], 128, 128, 8
    $region13: #{solo_generator.1} parent=1 // pred_fallthru
      _
    // Predicated region
    $region14: #{solo_generator.1} parent=1 // pred_check
      _
    $region15: #{solo_generator.1} parent=1 // pred_check_branch
      %1195 = sbr.rel (0) target = $region17
    $region16: #{solo_generator.1} parent=1 // pred_region
      %1196 = dma.done [#allocation3], 4096
    $region17: #{solo_generator.1} parent=1 // pred_fallthru
      _
    %1197 = vsyncpa [#allocation3], 1
    %1198 = vsyncpa [#allocation4], 1

</llo_original>
